<compile_context>
chip_gen: v6e
topology: v6e:2x2x1
jax: 0.10.0
libtpu: 0.0.40
codegen_flags: <defaults>
</compile_context>

<pallas_src>
import functools

import jax
import jax.numpy as jnp
from jax.experimental import pallas as pl
from jax.experimental.pallas import tpu as pltpu

_PAIRWISE_EPS = 1e-6  # matches torch.nn.functional.pairwise_distance default eps


def _round_up(x, m):
    return ((x + m - 1) // m) * m


def _cdiv(a, b):
    return (a + b - 1) // b


def _contrastive_loss_kernel(x1_ref, x2_ref, label_ref, out_ref, acc_ref, *,
                             margin, batch, block_rows, tiles_per_core):
    c = pl.program_id(0)   # TensorCore shard (leading "parallel" axis)
    i = pl.program_id(1)   # batch tile within this core's shard

    @pl.when(i == 0)
    def _init():
        acc_ref[...] = jnp.zeros_like(acc_ref)

    x1 = x1_ref[...].astype(jnp.float32)         # (TB, D)
    x2 = x2_ref[...].astype(jnp.float32)         # (TB, D)
    lbl = label_ref[...].astype(jnp.float32)     # (TB, 1)

    diff = x1 - x2 + _PAIRWISE_EPS                              # torch eps parity
    sq_dist = jnp.sum(diff * diff, axis=-1, keepdims=True)      # (TB, 1)

    # Mask ragged-tail / duplicated-block rows BEFORE the sqrt so garbage in
    # the out-of-bounds region of a partial block can never produce NaN/Inf.
    row0 = (c * tiles_per_core + i) * block_rows
    row = row0 + jax.lax.broadcasted_iota(jnp.int32, sq_dist.shape, 0)
    valid = row < batch
    sq_dist = jnp.where(valid, sq_dist, 0.0)
    lbl = jnp.where(valid, lbl, 0.0)

    dist = jnp.sqrt(sq_dist)                                    # euclidean distance
    pos_term = (1.0 - lbl) * sq_dist                            # (1-label) * d^2
    hinge = jnp.maximum(margin - dist, 0.0)
    neg_term = lbl * (hinge * hinge)                            # label * clamp(m-d,0)^2
    per_sample = pos_term + neg_term                            # 0 for masked rows

    acc_ref[...] += jnp.sum(per_sample, axis=0, keepdims=True)  # (1, 1)

    @pl.when(i == pl.num_programs(1) - 1)
    def _finalize():
        out_ref[0] = acc_ref[...]   # per-core partial SUM; mean taken in wrapper


def contrastive_loss(output1, output2, label, margin=2.0, *, block_rows=None,
                     num_cores=None):
    B, D = output1.shape
    assert output2.shape == (B, D)
    assert label.shape == (B, 1)

    itemsize = jnp.dtype(output1.dtype).itemsize

    # ---- chip-aware VMEM budgets -----------------------------------------
    try:
        vmem_physical = int(pltpu.get_tpu_info().vmem_capacity_bytes)
    except Exception:
        vmem_physical = 0                        # unknown -> conservative
    if vmem_physical >= 128 * 1024 * 1024:       # v5e / v6e: 128 MiB, 1 TC
        tile_budget = 48 * 1024 * 1024
        vmem_limit = 64 * 1024 * 1024
        auto_cores = 1
    elif vmem_physical > 0:                      # v7x: 64 MiB per TC, 2 TCs
        tile_budget = 32 * 1024 * 1024
        vmem_limit = 48 * 1024 * 1024
        auto_cores = 2
    else:                                        # unknown hardware
        tile_budget = 24 * 1024 * 1024
        vmem_limit = 40 * 1024 * 1024
        auto_cores = 1
    if num_cores is None:
        num_cores = auto_cores

    # ---- tile sizing (counts lane-padded labels + f32 temporaries) --------
    n_buf = 2                                    # BlockSpec double buffering
    bytes_per_row = (
        n_buf * 2 * D * itemsize                 # x1 + x2 input tiles (pipelined)
        + n_buf * 128 * 4                        # (tb,1) label tile lane-pads to 128 f32 lanes
        + 3 * D * 4                              # in-kernel f32 upcasts / diff temporaries
    )
    if block_rows is None:
        tb = max(32, (tile_budget // bytes_per_row) // 32 * 32)
        tb = min(tb, _round_up(B, 32))
    else:
        tb = _round_up(int(block_rows), 8)

    tiles_total = _cdiv(B, tb)
    if tiles_total < num_cores:
        num_cores = 1
    tiles_per_core = _cdiv(tiles_total, num_cores)
    last_tile = tiles_total - 1

    kernel = functools.partial(
        _contrastive_loss_kernel,
        margin=float(margin), batch=B, block_rows=tb,
        tiles_per_core=tiles_per_core)

    def in_map(c, i):
        # Clamp so the trailing dummy tile on the second core (odd tile count)
        # never issues an out-of-bounds DMA; its rows are masked in-kernel.
        return (jnp.minimum(c * tiles_per_core + i, last_tile), 0)

    cost = pl.CostEstimate(
        flops=5 * B * D + 10 * B,
        transcendentals=B,   # one sqrt per row
        bytes_accessed=2 * B * D * itemsize
        + B * jnp.dtype(label.dtype).itemsize + 4 * num_cores,
    )

    partials = pl.pallas_call(
        kernel,
        out_shape=jax.ShapeDtypeStruct((num_cores, 1, 1), jnp.float32),
        grid_spec=pltpu.PrefetchScalarGridSpec(
            num_scalar_prefetch=0,
            grid=(num_cores, tiles_per_core),
            in_specs=[
                pl.BlockSpec((tb, D), in_map),
                pl.BlockSpec((tb, D), in_map),
                pl.BlockSpec((tb, 1), in_map),
            ],
            out_specs=pl.BlockSpec((1, 1, 1), lambda c, i: (c, 0, 0)),
            scratch_shapes=[pltpu.VMEM((1, 1), jnp.float32)],
        ),
        compiler_params=pltpu.CompilerParams(
            dimension_semantics=("parallel", "arbitrary"),
            vmem_limit_bytes=vmem_limit,
        ),
        cost_estimate=cost,
    )(output1, output2, label)

    return jnp.sum(partials) / B


def _reference(output1, output2, label, margin=2.0):
    # Pure-JAX reference mirroring the PyTorch forward.
    diff = output1 - output2 + _PAIRWISE_EPS
    dist = jnp.sqrt(jnp.sum(diff * diff, axis=-1, keepdims=True))
    loss = (1.0 - label) * dist ** 2 + label * jnp.maximum(margin - dist, 0.0) ** 2
    return jnp.mean(loss)


if __name__ == "__main__":
    key = jax.random.PRNGKey(0)
    k1, k2, k3 = jax.random.split(key, 3)

    # 1) Small, tile-friendly shapes: batch=8, feature dim=128, f32 inputs.
    B, D = 8, 128
    o1 = jax.random.normal(k1, (B, D), dtype=jnp.float32)
    o2 = jax.random.normal(k2, (B, D), dtype=jnp.float32)
    lb = jax.random.bernoulli(k3, 0.5, (B, 1)).astype(jnp.float32)
    loss = contrastive_loss(o1, o2, lb, margin=2.0)
    jax.block_until_ready(loss)
    ref = _reference(o1, o2, lb, margin=2.0)
    assert jnp.allclose(loss, ref, rtol=1e-5, atol=1e-5), (loss, ref)

    # 2) Ragged batch (in-kernel tail masking, no host-side pad) with bf16.
    B2, D2 = 13, 96
    o1 = jax.random.normal(k1, (B2, D2), dtype=jnp.bfloat16)
    o2 = jax.random.normal(k2, (B2, D2), dtype=jnp.bfloat16)
    lb = jax.random.bernoulli(k3, 0.5, (B2, 1)).astype(jnp.float32)
    loss2 = contrastive_loss(o1, o2, lb, margin=2.0)
    jax.block_until_ready(loss2)
    ref2 = _reference(o1.astype(jnp.float32), o2.astype(jnp.float32), lb, margin=2.0)
    assert jnp.allclose(loss2, ref2, rtol=2e-2, atol=2e-2), (loss2, ref2)

    # 3) Multi-tile + 2-core partial-sum path (odd tile count exercises the
    #    clamped dummy tile on core 1); runs serially (and correctly) on 1-TC chips.
    B3, D3 = 80, 64
    o1 = jax.random.normal(k1, (B3, D3), dtype=jnp.float32)
    o2 = jax.random.normal(k2, (B3, D3), dtype=jnp.float32)
    lb = jax.random.bernoulli(k3, 0.5, (B3, 1)).astype(jnp.float32)
    loss3 = contrastive_loss(o1, o2, lb, margin=2.0, block_rows=32, num_cores=2)
    jax.block_until_ready(loss3)
    ref3 = _reference(o1, o2, lb, margin=2.0)
    assert jnp.allclose(loss3, ref3, rtol=1e-5, atol=1e-5), (loss3, ref3)

    print("KERNEL_OK")
</pallas_src>

<mosaic_0001>
module attributes {stable_mosaic.version = 11 : i64} {
  func.func @_contrastive_loss_kernel(%arg0: i32, %arg1: i32, %arg2: memref<32x128xf32, #tpu.memory_space<vmem>>, %arg3: memref<32x128xf32, #tpu.memory_space<vmem>>, %arg4: memref<32x1xf32, #tpu.memory_space<vmem>>, %arg5: memref<1x1x1xf32, #tpu.memory_space<vmem>>, %arg6: memref<1x1xf32, #tpu.memory_space<vmem>>) attributes {dimension_semantics = [#tpu.dimension_semantics<parallel>, #tpu.dimension_semantics<arbitrary>], iteration_bounds = array<i64: 1, 1>, scalar_prefetch = 0 : i64, scratch_operands = 1 : i64, tpu.core_type = #tpu.core_type<tc>, window_params = [{transform_indices = @transform_0, window_bounds = array<i64: 32, 128>}, {transform_indices = @transform_1, window_bounds = array<i64: 32, 128>}, {transform_indices = @transform_2, window_bounds = array<i64: 32, 1>}, {transform_indices = @transform_3, window_bounds = array<i64: 1, 1, 1>}]} {
    %c0_i32 = arith.constant 0 : i32
    %0 = arith.cmpi eq, %arg1, %c0_i32 : i32
    %1 = arith.extui %0 : i1 to i32
    %c0_i32_0 = arith.constant 0 : i32
    %2 = arith.cmpi ne, %1, %c0_i32_0 : i32
    scf.if %2 {
      %cst_19 = arith.constant 0.000000e+00 : f32
      %43 = vector.broadcast %cst_19 : f32 to vector<1x1xf32>
      %c0_20 = arith.constant 0 : index
      %c0_21 = arith.constant 0 : index
      %44 = vector.load %arg6[%c0_20, %c0_21] : memref<1x1xf32, #tpu.memory_space<vmem>>, vector<1x1xf32>
      tpu.vector_store %arg6[%c0_20, %c0_21], %43 {strides = array<i32>} : memref<1x1xf32, #tpu.memory_space<vmem>>, vector<1x1xf32>,
    } else {
    }
    %c0 = arith.constant 0 : index
    %c0_1 = arith.constant 0 : index
    %3 = vector.load %arg2[%c0, %c0_1] : memref<32x128xf32, #tpu.memory_space<vmem>>, vector<32x128xf32>
    %c0_2 = arith.constant 0 : index
    %c0_3 = arith.constant 0 : index
    %4 = vector.load %arg3[%c0_2, %c0_3] : memref<32x128xf32, #tpu.memory_space<vmem>>, vector<32x128xf32>
    %c0_4 = arith.constant 0 : index
    %c0_5 = arith.constant 0 : index
    %5 = vector.load %arg4[%c0_4, %c0_5] : memref<32x1xf32, #tpu.memory_space<vmem>>, vector<32x1xf32>
    %6 = arith.subf %3, %4 : vector<32x128xf32>
    %cst = arith.constant 9.99999997E-7 : f32
    %7 = vector.broadcast %cst : f32 to vector<32x128xf32>
    %8 = arith.addf %6, %7 : vector<32x128xf32>
    %9 = arith.mulf %8, %8 : vector<32x128xf32>
    %cst_6 = arith.constant dense<0.000000e+00> : vector<32xf32>
    %10 = vector.multi_reduction <add>, %9, %cst_6 [1] : vector<32x128xf32> to vector<32xf32>
    %11 = vector.shape_cast %10 : vector<32xf32> to vector<32x1xf32>
    %c1_i32 = arith.constant 1 : i32
    %12 = arith.muli %arg0, %c1_i32 : i32
    %13 = arith.addi %12, %arg1 : i32
    %c32_i32 = arith.constant 32 : i32
    %14 = arith.muli %13, %c32_i32 : i32
    %15 = tpu.iota {dimensions = array<i32: 0>} : vector<32x1xi32>
    %16 = vector.broadcast %14 : i32 to vector<32x1xi32>
    %17 = arith.addi %16, %15 : vector<32x1xi32>
    %c8_i32 = arith.constant 8 : i32
    %18 = vector.broadcast %c8_i32 : i32 to vector<32x1xi32>
    %19 = arith.cmpi slt, %17, %18 : vector<32x1xi32>
    %cst_7 = arith.constant 0.000000e+00 : f32
    %20 = vector.broadcast %cst_7 : f32 to vector<32x1xf32>
    %21 = arith.select %19, %11, %20 : vector<32x1xi1>, vector<32x1xf32>
    %cst_8 = arith.constant 0.000000e+00 : f32
    %22 = vector.broadcast %cst_8 : f32 to vector<32x1xf32>
    %23 = arith.select %19, %5, %22 : vector<32x1xi1>, vector<32x1xf32>
    %24 = math.sqrt %21 : vector<32x1xf32>
    %cst_9 = arith.constant 1.000000e+00 : f32
    %25 = vector.broadcast %cst_9 : f32 to vector<32x1xf32>
    %26 = arith.subf %25, %23 : vector<32x1xf32>
    %27 = arith.mulf %26, %21 : vector<32x1xf32>
    %cst_10 = arith.constant 2.000000e+00 : f32
    %28 = vector.broadcast %cst_10 : f32 to vector<32x1xf32>
    %29 = arith.subf %28, %24 : vector<32x1xf32>
    %cst_11 = arith.constant 0.000000e+00 : f32
    %30 = vector.broadcast %cst_11 : f32 to vector<32x1xf32>
    %31 = arith.maximumf %29, %30 : vector<32x1xf32>
    %32 = arith.mulf %31, %31 : vector<32x1xf32>
    %33 = arith.mulf %23, %32 : vector<32x1xf32>
    %34 = arith.addf %27, %33 : vector<32x1xf32>
    %c0_12 = arith.constant 0 : index
    %c0_13 = arith.constant 0 : index
    %35 = vector.load %arg6[%c0_12, %c0_13] : memref<1x1xf32, #tpu.memory_space<vmem>>, vector<1x1xf32>
    %cst_14 = arith.constant dense<0.000000e+00> : vector<1xf32>
    %36 = vector.multi_reduction <add>, %34, %cst_14 [0] : vector<32x1xf32> to vector<1xf32>
    %37 = vector.shape_cast %36 : vector<1xf32> to vector<1x1xf32>
    %38 = arith.addf %35, %37 : vector<1x1xf32>
    %c0_15 = arith.constant 0 : index
    %c0_16 = arith.constant 0 : index
    %39 = vector.load %arg6[%c0_15, %c0_16] : memref<1x1xf32, #tpu.memory_space<vmem>>, vector<1x1xf32>
    tpu.vector_store %arg6[%c0_15, %c0_16], %38 {strides = array<i32>} : memref<1x1xf32, #tpu.memory_space<vmem>>, vector<1x1xf32>,
    %c0_i32_17 = arith.constant 0 : i32
    %40 = arith.cmpi eq, %arg1, %c0_i32_17 : i32
    %41 = arith.extui %40 : i1 to i32
    %c0_i32_18 = arith.constant 0 : i32
    %42 = arith.cmpi ne, %41, %c0_i32_18 : i32
    scf.if %42 {
      %c0_19 = arith.constant 0 : index
      %c0_20 = arith.constant 0 : index
      %43 = vector.load %arg6[%c0_19, %c0_20] : memref<1x1xf32, #tpu.memory_space<vmem>>, vector<1x1xf32>
      %c0_21 = arith.constant 0 : index
      %c0_22 = arith.constant 0 : index
      %c0_23 = arith.constant 0 : index
      %44 = vector.load %arg5[%c0_21, %c0_22, %c0_23] : memref<1x1x1xf32, #tpu.memory_space<vmem>>, vector<1x1x1xf32>
      %45 = vector.shape_cast %44 : vector<1x1x1xf32> to vector<1x1xf32>
      %46 = vector.shape_cast %43 : vector<1x1xf32> to vector<1x1x1xf32>
      tpu.vector_store %arg5[%c0_21, %c0_22, %c0_23], %46 {strides = array<i32>} : memref<1x1x1xf32, #tpu.memory_space<vmem>>, vector<1x1x1xf32>,
    } else {
    }
    return
  }
  func.func @transform_0(%arg0: i32, %arg1: i32) -> (i32, i32) {
    %c1_i32 = arith.constant 1 : i32
    %0 = arith.muli %arg0, %c1_i32 : i32
    %1 = arith.addi %0, %arg1 : i32
    %c0_i32 = arith.constant 0 : i32
    %2 = arith.minsi %1, %c0_i32 : i32
    %c0_i32_0 = arith.constant 0 : i32
    %c0_i32_1 = arith.constant 0 : i32
    return %2, %c0_i32_0 : i32, i32
  }
  func.func @transform_1(%arg0: i32, %arg1: i32) -> (i32, i32) {
    %c1_i32 = arith.constant 1 : i32
    %0 = arith.muli %arg0, %c1_i32 : i32
    %1 = arith.addi %0, %arg1 : i32
    %c0_i32 = arith.constant 0 : i32
    %2 = arith.minsi %1, %c0_i32 : i32
    %c0_i32_0 = arith.constant 0 : i32
    %c0_i32_1 = arith.constant 0 : i32
    return %2, %c0_i32_0 : i32, i32
  }
  func.func @transform_2(%arg0: i32, %arg1: i32) -> (i32, i32) {
    %c1_i32 = arith.constant 1 : i32
    %0 = arith.muli %arg0, %c1_i32 : i32
    %1 = arith.addi %0, %arg1 : i32
    %c0_i32 = arith.constant 0 : i32
    %2 = arith.minsi %1, %c0_i32 : i32
    %c0_i32_0 = arith.constant 0 : i32
    %c0_i32_1 = arith.constant 0 : i32
    return %2, %c0_i32_0 : i32, i32
  }
  func.func @transform_3(%arg0: i32, %arg1: i32) -> (i32, i32, i32) {
    %c0_i32 = arith.constant 0 : i32
    %c0_i32_0 = arith.constant 0 : i32
    %c0_i32_1 = arith.constant 0 : i32
    return %arg0, %c0_i32, %c0_i32_0 : i32, i32, i32
  }
}

</mosaic_0001>

<llo_original>
// kernel: tpu_custom_call.1
$region0: #{tpu_custom_call.1}
  #allocation0 [shape = 'u32[]', space=smem, size = 0x4, offset = 0x4, fixed_abs, tag = 'smem constant byte address 0x4 - core index']
  #allocation1 [shape = 'u32[144,128]{1,0:T(1,128)}', space=vmem, size = 0x12000, scoped, tag = 'internal scratch']
  #allocation2 [shape = 'f32[1,1]{1,0:T(1,128)}', space=vmem, size = 0x200, scoped, tag = 'scratch operand']
  %s0 = inlined_call_operand.vmem [shape: f32[8,128], index: 0, kind: input, shape index: {}]
  %s1 = inlined_call_operand.hbm [shape: f32[8,128], index: 1, kind: input, shape index: {}]
  %s2 = inlined_call_operand.vmem [shape: f32[8,1], index: 2, kind: input, shape index: {}]
  %s3 = inlined_call_operand.hbm [shape: f32[1,1,1], index: 3, kind: output, shape index: {}]
  %s4 = sld [smem:[#allocation0]]
  $region34: #{tpu_custom_call.1} parent=0
    _
  %s6 = ssub.s32 1, %s4
  %s7 = scalar_select 0, %s6, %s4
  $region1: #{tpu_custom_call.1} parent=0
    #allocation3 [shape = 'u8[16384]{0}', space=vmem, size = 0x4000, scoped, tag = 'input window, operand 1, single buffered']
    #allocation4 [shape = 's32[1]{0}', space=sflag, size = 0x4, scoped, tag = 'scoped memory for tpu_custom_call.1']
    #allocation5 [shape = 's32[1]{0}', space=sflag, size = 0x4, scoped, tag = 'scoped memory for tpu_custom_call.1']
    #allocation6 [shape = 'u8[512]{0}', space=vmem, size = 0x400, scoped, tag = 'output window, operand 0, single buffered']
    %8 = vsyncpa [#allocation4], 0
    %9 = vsyncpa [#allocation5], 0
    // Predicated region
    $region2: #{tpu_custom_call.1} parent=1 // pred_check
      _
    $region3: #{tpu_custom_call.1} parent=1 // pred_check_branch
      %11 = sbr.rel (0) target = $region5
    $region4: #{tpu_custom_call.1} parent=1 // pred_region
      %s12 = sadd.s32 0, 0
      %p13 = scmp.lt.s32.totalorder %s12, 0
      %s14 = scalar_select %p13, %s12, 0
      %s15 = smul.u32 4, %s14
      %s16 = ssub.s32 1, %s15
      %s17 = smul.u32 128, %s16
      %p18 = scmp.lt.s32.totalorder %s15, 0
      %s19 = scalar_select %p18, %s15, 0
      %s20 = smul.addr %s19, 8
      %s21 = scalar_lea.vmem %s0, %s20
      %s22 = sadd.s32 0, 0
      %p23 = scmp.lt.s32.totalorder %s22, 0
      %s24 = scalar_select %p23, %s22, 0
      %s25 = smul.u32 4, %s24
      %s26 = ssub.s32 1, %s25
      %s27 = smul.u32 128, %s26
    $region5: #{tpu_custom_call.1} parent=1 // pred_fallthru
      _
    // Predicated region
    $region6: #{tpu_custom_call.1} parent=1 // pred_check
      _
    $region7: #{tpu_custom_call.1} parent=1 // pred_check_branch
      %29 = sbr.rel (0) target = $region9
    $region8: #{tpu_custom_call.1} parent=1 // pred_region
      %s30 = sadd.s32 0, 0
      %p31 = scmp.lt.s32.totalorder %s30, 0
      %s32 = scalar_select %p31, %s30, 0
      %s33 = smul.u32 4, %s32
      %s34 = ssub.s32 1, %s33
      %s35 = smul.u32 128, %s34
      %s37 = ssub.s32 512, %s35
      %38 = vsyncadd [#allocation4], %s37
      %p39 = scmp.ne.s32.totalorder 0, %s35
      %s40 = smul.addr %s33, 128
      %s41 = scalar_lea.hbm %s1, %s40
      %s42 = smul.u32 8, %s34
      %s43 = sshll.u32 [#allocation3], 4
      %s44 = int_to_ptr.vmem [resolvable:$true] %s43
      %s45 = sshll.u32 %s42, 4
      %49 = dma.hbm_to_vmem [thread:$0]  (%p39), %s41, %s45, %s44, [#allocation4], 128, 128, 8
    $region9: #{tpu_custom_call.1} parent=1 // pred_fallthru
      _
    // Predicated region
    $region10: #{tpu_custom_call.1} parent=1 // pred_check
      _
    $region11: #{tpu_custom_call.1} parent=1 // pred_check_branch
      %51 = sbr.rel (0) target = $region13
    $region12: #{tpu_custom_call.1} parent=1 // pred_region
      %s52 = sadd.s32 0, 0
      %p53 = scmp.lt.s32.totalorder %s52, 0
      %s54 = scalar_select %p53, %s52, 0
      %s55 = smul.u32 4, %s54
      %s56 = ssub.s32 1, %s55
      %s57 = smul.u32 128, %s56
      %p58 = scmp.lt.s32.totalorder %s55, 0
      %s59 = scalar_select %p58, %s55, 0
      %s60 = smul.addr %s59, 8
      %s61 = scalar_lea.vmem %s2, %s60
      %s62 = sadd.s32 0, 0
      %p63 = scmp.lt.s32.totalorder %s62, 0
      %s64 = scalar_select %p63, %s62, 0
      %s65 = smul.u32 4, %s64
      %s66 = ssub.s32 1, %s65
      %s67 = smul.u32 128, %s66
    $region13: #{tpu_custom_call.1} parent=1 // pred_fallthru
      _
    // Predicated region
    $region14: #{tpu_custom_call.1} parent=1 // pred_check
      _
    $region15: #{tpu_custom_call.1} parent=1 // pred_check_branch
      %69 = sbr.rel (0) target = $region17
    $region16: #{tpu_custom_call.1} parent=1 // pred_region
      %70 = dma.done [#allocation4], 512
    $region17: #{tpu_custom_call.1} parent=1 // pred_fallthru
      _
    %s71 = sadd.s32 0, 0
    %p72 = scmp.lt.s32.totalorder %s71, 0
    %s73 = scalar_select %p72, %s71, 0
    %s74 = smul.u32 4, %s73
    %s75 = ssub.s32 1, %s74
    %s76 = smul.u32 128, %s75
    %p77 = scmp.lt.s32.totalorder %s74, 0
    %s78 = scalar_select %p77, %s74, 0
    %s79 = smul.addr %s78, 8
    %s80 = scalar_lea.vmem %s0, %s79
    %s81 = sadd.s32 0, 0
    %p82 = scmp.lt.s32.totalorder %s81, 0
    %s83 = scalar_select %p82, %s81, 0
    %s84 = smul.u32 4, %s83
    %s85 = ssub.s32 1, %s84
    %s86 = smul.u32 128, %s85
    %p87 = scmp.lt.s32.totalorder %s84, 0
    %s88 = scalar_select %p87, %s84, 0
    %s89 = smul.addr %s88, 8
    %s90 = scalar_lea.vmem %s2, %s89
    %s91 = sadd.s32 0, 0
    %p92 = scmp.lt.s32.totalorder %s91, 0
    %s93 = scalar_select %p92, %s91, 0
    %s94 = smul.u32 4, %s93
    %s95 = ssub.s32 1, %s94
    %s96 = smul.u32 128, %s95
    %p97 = scmp.lt.s32.totalorder %s94, 0
    %s98 = scalar_select %p97, %s94, 0
    %s99 = smul.addr %s98, 8
    %s100 = scalar_lea.vmem %s0, %s99
    %s101 = sadd.s32 0, 0
    %p102 = scmp.lt.s32.totalorder %s101, 0
    %s103 = scalar_select %p102, %s101, 0
    %s104 = smul.u32 4, %s103
    %s105 = ssub.s32 1, %s104
    %s106 = smul.u32 128, %s105
    %s107 = sadd.s32 0, 0
    %p108 = scmp.lt.s32.totalorder %s107, 0
    %s109 = scalar_select %p108, %s107, 0
    %s110 = smul.u32 4, %s109
    %s111 = ssub.s32 1, %s110
    %s112 = smul.u32 128, %s111
    %s113 = sadd.s32 0, 0
    %p114 = scmp.lt.s32.totalorder %s113, 0
    %s115 = scalar_select %p114, %s113, 0
    %s116 = smul.u32 4, %s115
    %s117 = ssub.s32 1, %s116
    %s118 = smul.u32 128, %s117
    %p119 = scmp.lt.s32.totalorder %s116, 0
    %s120 = scalar_select %p119, %s116, 0
    %s121 = smul.addr %s120, 8
    %s122 = scalar_lea.vmem %s2, %s121
    %s123 = sadd.s32 0, 0
    %p124 = scmp.lt.s32.totalorder %s123, 0
    %s125 = scalar_select %p124, %s123, 0
    %s126 = smul.u32 4, %s125
    %s127 = ssub.s32 1, %s126
    %s128 = smul.u32 128, %s127
    %p129 = scmp.eq.s32.totalorder 0, 0
    // Predicated region
    $region18: #{tpu_custom_call.1} parent=1 // pred_check
      %p130 = pneg %p129
    $region19: #{tpu_custom_call.1} parent=1 // pred_check_branch
      %132 = sbr.rel (%p130) target = $region21
    $region20: #{tpu_custom_call.1} parent=1 // pred_region
      %vm133 = vcmask 0
      %134 = vst.msk [vmem:[#allocation2] sm:$0x1] %vm133, 0.0
    $region21: #{tpu_custom_call.1} parent=1 // pred_fallthru
      _
    %v135 = vld [vmem:[%s100] sm:$0xff]
    %v136 = vld [vmem:[%s100 + $0x8] sm:$0xff]
    %v137 = vld [vmem:[%s100 + $0x10] sm:$0xff]
    %v138 = vld [vmem:[%s100 + $0x18] sm:$0xff]
    %v139 = vld [vmem:[#allocation3] sm:$0xff]
    %v140 = vld [vmem:[#allocation3 + $0x8] sm:$0xff]
    %v141 = vld [vmem:[#allocation3 + $0x10] sm:$0xff]
    %v142 = vld [vmem:[#allocation3 + $0x18] sm:$0xff]
    %v143 = vld [vmem:[%s122] sm:$0xff]
    %v144 = vld [vmem:[%s122 + $0x8] sm:$0xff]
    %v145 = vld [vmem:[%s122 + $0x10] sm:$0xff]
    %v146 = vld [vmem:[%s122 + $0x18] sm:$0xff]
    %v147 = vsub.f32 %v135, %v139
    %v148 = vsub.f32 %v136, %v140
    %v149 = vsub.f32 %v137, %v141
    %v150 = vsub.f32 %v138, %v142
    %v151 = vadd.f32 %v147, 1e-06
    %v152 = vadd.f32 %v148, 1e-06
    %v153 = vadd.f32 %v149, 1e-06
    %v154 = vadd.f32 %v150, 1e-06
    %v155 = vmul.f32 %v151, %v151
    %v156 = vmul.f32 %v152, %v152
    %v157 = vmul.f32 %v153, %v153
    %v158 = vmul.f32 %v154, %v154
    %159 = vadd.xlane.f32.xlu0 %v155
    %v160 = vpop.xlane.xlu0 %159
    %161 = vadd.xlane.f32.xlu0 %v156
    %v162 = vpop.xlane.xlu0 %161
    %163 = vadd.xlane.f32.xlu0 %v157
    %v164 = vpop.xlane.xlu0 %163
    %165 = vadd.xlane.f32.xlu0 %v158
    %v166 = vpop.xlane.xlu0 %165
    %s167 = sadd.s32 0, 0
    %s168 = smul.u32 %s167, 32
    %v169 = vlaneseq
    %v170 = vshrl.u32 %v169, 7
    %v171 = vadd.s32 %v170, 8
    %v172 = vadd.s32 %v170, 16
    %v173 = vadd.s32 %v170, 24
    %v174 = vstv %s168
    %v175 = vadd.s32 %v174, %v170
    %v176 = vadd.s32 %v174, %v171
    %v177 = vadd.s32 %v174, %v172
    %v178 = vadd.s32 %v174, %v173
    %vm179 = vcmp.lt.s32.totalorder %v175, 8
    %vm180 = vcmp.lt.s32.totalorder %v176, 8
    %vm181 = vcmp.lt.s32.totalorder %v177, 8
    %vm182 = vcmp.lt.s32.totalorder %v178, 8
    %v183 = vsel %vm179, %v160, 0.0
    %v184 = vsel %vm180, %v162, 0.0
    %v185 = vsel %vm181, %v164, 0.0
    %v186 = vsel %vm182, %v166, 0.0
    %v187 = vsel %vm179, %v143, 0.0
    %v188 = vsel %vm180, %v144, 0.0
    %v189 = vsel %vm181, %v145, 0.0
    %v190 = vsel %vm182, %v146, 0.0
    %v191 = vrsqrt.pop %v183
    %v192 = vmul.f32 %v183, %v191
    %vm193 = vcmp.eq.f32.partialorder %v183, inf
    %v194 = vsel %vm193, %v183, %v192
    %vm195 = vcmp.eq.f32.partialorder %v183, 0.0
    %v196 = vand.u32 %v183, 2147483648
    %v197 = vsel %vm195, %v196, %v194
    %v198 = vrsqrt.pop %v184
    %v199 = vmul.f32 %v184, %v198
    %vm200 = vcmp.eq.f32.partialorder %v184, inf
    %v201 = vsel %vm200, %v184, %v199
    %vm202 = vcmp.eq.f32.partialorder %v184, 0.0
    %v203 = vand.u32 %v184, 2147483648
    %v204 = vsel %vm202, %v203, %v201
    %v205 = vrsqrt.pop %v185
    %v206 = vmul.f32 %v185, %v205
    %vm207 = vcmp.eq.f32.partialorder %v185, inf
    %v208 = vsel %vm207, %v185, %v206
    %vm209 = vcmp.eq.f32.partialorder %v185, 0.0
    %v210 = vand.u32 %v185, 2147483648
    %v211 = vsel %vm209, %v210, %v208
    %v212 = vrsqrt.pop %v186
    %v213 = vmul.f32 %v186, %v212
    %vm214 = vcmp.eq.f32.partialorder %v186, inf
    %v215 = vsel %vm214, %v186, %v213
    %vm216 = vcmp.eq.f32.partialorder %v186, 0.0
    %v217 = vand.u32 %v186, 2147483648
    %v218 = vsel %vm216, %v217, %v215
    %v219 = vsub.f32 1.0, %v187
    %v220 = vsub.f32 1.0, %v188
    %v221 = vsub.f32 1.0, %v189
    %v222 = vsub.f32 1.0, %v190
    %v223 = vmul.f32 %v219, %v183
    %v224 = vmul.f32 %v220, %v184
    %v225 = vmul.f32 %v221, %v185
    %v226 = vmul.f32 %v222, %v186
    %v227 = vsub.f32 2.0, %v197
    %v228 = vsub.f32 2.0, %v204
    %v229 = vsub.f32 2.0, %v211
    %v230 = vsub.f32 2.0, %v218
    %v231 = vmax.f32 %v227, 0.0
    %v232 = vmax.f32 %v228, 0.0
    %v233 = vmax.f32 %v229, 0.0
    %v234 = vmax.f32 %v230, 0.0
    %v235 = vmul.f32 %v231, %v231
    %v236 = vmul.f32 %v232, %v232
    %v237 = vmul.f32 %v233, %v233
    %v238 = vmul.f32 %v234, %v234
    %v239 = vmul.f32 %v187, %v235
    %v240 = vmul.f32 %v188, %v236
    %v241 = vmul.f32 %v189, %v237
    %v242 = vmul.f32 %v190, %v238
    %v243 = vadd.f32 %v223, %v239
    %v244 = vadd.f32 %v224, %v240
    %v245 = vadd.f32 %v225, %v241
    %v246 = vadd.f32 %v226, %v242
    %v247 = vld [vmem:[#allocation2] sm:$0x1]
    %vm248 = vcmask 7168
    %v249 = vsel %vm248, %v243, 0.0
    %v250 = vsel %vm248, %v244, 0.0
    %v251 = vadd.f32 %v249, %v250
    %v252 = vsel %vm248, %v245, 0.0
    %v253 = vadd.f32 %v251, %v252
    %v254 = vsel %vm248, %v246, 0.0
    %v255 = vadd.f32 %v253, %v254
    %v256 = vrot.slane %v255, 4
    %v257 = vadd.f32 %v255, %v256
    %v258 = vrot.slane %v257, 2
    %v259 = vadd.f32 %v257, %v258
    %v260 = vrot.slane %v259, 1
    %v261 = vadd.f32 %v259, %v260
    %v262 = vadd.f32 %v247, %v261
    %vm263 = vcmask 0
    %264 = vst.msk [vmem:[#allocation2] sm:$0x1] %vm263, %v262
    // Predicated region
    $region22: #{tpu_custom_call.1} parent=1 // pred_check
      %p265 = pneg %p129
    $region23: #{tpu_custom_call.1} parent=1 // pred_check_branch
      %267 = sbr.rel (%p265) target = $region25
    $region24: #{tpu_custom_call.1} parent=1 // pred_region
      %v268 = vld [vmem:[#allocation2] sm:$0x1]
      %269 = vst.msk [vmem:[#allocation6] sm:$0x1] %vm263, %v268
    $region25: #{tpu_custom_call.1} parent=1 // pred_fallthru
      _
    // Predicated region
    $region26: #{tpu_custom_call.1} parent=1 // pred_check
      _
    $region27: #{tpu_custom_call.1} parent=1 // pred_check_branch
      %271 = sbr.rel (0) target = $region29
    $region28: #{tpu_custom_call.1} parent=1 // pred_region
      %s273 = ssub.s32 16, 16
      %274 = vsyncadd [#allocation5], %s273
      %s276 = sshll.u32 [#allocation6], 4
      %s277 = int_to_ptr.vmem [resolvable:$true] %s276
      %279 = dma.vmem_to_hbm [thread:$0]  %s277, 16, %s3, [#allocation5]
    $region29: #{tpu_custom_call.1} parent=1 // pred_fallthru
      _
    // Predicated region
    $region30: #{tpu_custom_call.1} parent=1 // pred_check
      _
    $region31: #{tpu_custom_call.1} parent=1 // pred_check_branch
      %281 = sbr.rel (0) target = $region33
    $region32: #{tpu_custom_call.1} parent=1 // pred_region
      %282 = dma.done [#allocation5], 16
    $region33: #{tpu_custom_call.1} parent=1 // pred_fallthru
      _
    %283 = vsyncpa [#allocation4], 1
    %284 = vsyncpa [#allocation5], 1

</llo_original>
